<compile_context>
chip_gen: v7x
topology: tpu7x:2x2x1
jax: 0.10.0
libtpu: 0.0.40
codegen_flags: <defaults>
</compile_context>

<pallas_src>
import functools

import jax
import jax.numpy as jnp
from jax import lax
from jax.experimental import pallas as pl
from jax.experimental.pallas import tpu as pltpu


def calc_padding_size(kernel_size: int, padding=None):
    if padding is None:
        padding = (kernel_size // 2 if isinstance(kernel_size, int)
                   else [s // 2 for s in kernel_size])
    return padding


def _round_up(x: int, m: int) -> int:
    return ((x + m - 1) // m) * m


def _pick_tile_m(m_valid: int) -> int:
    """Prefer an even grid length (v7x has 2 TensorCores), then minimal row
    padding, then the larger tile (amortizes ~0.35us per grid step)."""
    best_key, best_tm = None, 128
    for tm in (512, 256, 128):
        gm = -(-m_valid // tm)
        if gm < 2:                       # want >= 2 steps so pipelining overlaps
            continue
        waste = gm * tm - m_valid
        key = (gm % 2 != 0, waste, -tm)
        if best_key is None or key < best_key:
            best_key, best_tm = key, tm
    return best_tm


@functools.partial(jax.jit, static_argnames=("kernel", "stride", "padding"))
def convolution_block_forward(x_nchw, conv_w, conv_b, bn_gamma, bn_beta,
                              bn_mean, bn_var, *, kernel, stride, padding,
                              eps=1e-5):
    """Forward of ConvolutionBlock (eval-mode BN), NCHW in / NCHW out."""
    n, cin, h, w = x_nchw.shape
    cout = conv_w.shape[0]
    kh = kw = kernel
    pad = padding

    ho = (h + 2 * pad - kh) // stride + 1
    wo = (w + 2 * pad - kw) // stride + 1

    # ---- fold eval-mode BN into a per-output-channel affine -----------------
    inv_std = lax.rsqrt(bn_var + eps)
    scale = bn_gamma * inv_std                      # (Cout,)
    bias = (conv_b - bn_mean) * scale + bn_beta     # (Cout,)

    # ---- TPU-friendly channel / contraction padding --------------------------
    cin_p = _round_up(cin, 8)
    cout_p = _round_up(cout, 256) if cout > 128 else _round_up(cout, 128)
    k_taps = kh * kw
    k_real = k_taps * cin_p
    k_p = _round_up(k_real, 128)        # fused-K depth; 128 saturates v5e MXU
    k_zero = k_p - k_real

    # Weight: (Cout, Cin, kh, kw) -> (K_p, Cout_p), BN scale folded, bf16.
    w_t = jnp.transpose(conv_w, (2, 3, 1, 0)).reshape(k_taps, cin, cout)
    w_t = w_t * scale.reshape(1, 1, cout)
    w_t = jnp.pad(w_t, ((0, 0), (0, cin_p - cin), (0, cout_p - cout)))
    w_t = w_t.reshape(k_real, cout_p)
    w_t = jnp.pad(w_t, ((0, k_zero), (0, 0))).astype(jnp.bfloat16)

    bias_p = jnp.pad(bias, (0, cout_p - cout)).reshape(1, cout_p)
    bias_p = bias_p.astype(jnp.float32)

    # ---- zero-padded NHWC input flattened to (rows, Cin_p), bf16 -------------
    hp, wp = h + 2 * pad, w + 2 * pad
    m_valid = n * hp * wp

    tm = _pick_tile_m(m_valid)
    gm = pl.cdiv(m_valid, tm)
    m_pad = gm * tm

    # Row shifts of the kh*kw taps inside the flattened padded input.
    shifts = tuple(ky * wp + kx for ky in range(kh) for kx in range(kw))
    max_shift = shifts[-1]
    ovl = 64                               # overlap-block granularity
    assert tm % ovl == 0
    n_ovl = pl.cdiv(max_shift, ovl) if max_shift else 0
    rows_total = m_pad + n_ovl * ovl

    x_nhwc = jnp.transpose(x_nchw, (0, 2, 3, 1))
    xp = jnp.pad(x_nhwc, ((0, 0), (pad, pad), (pad, pad), (0, 0)))
    xf = xp.reshape(m_valid, cin)
    # one fused pad for trailing rows + channel lanes, cast in the same chain
    xf = jnp.pad(xf, ((0, rows_total - m_valid), (0, cin_p - cin)))
    xf = xf.astype(jnp.bfloat16)

    # ---- fused kernel: lane-concat taps -> single big-K matmul + bias + ReLU --
    def kernel_fn(*refs):
        x_main = refs[0]
        ovl_refs = refs[1:1 + n_ovl]
        w_ref, b_ref, o_ref = refs[1 + n_ovl:]
        parts = [x_main[...]] + [r[...] for r in ovl_refs]
        xwin = parts[0] if len(parts) == 1 else jnp.concatenate(parts, axis=0)
        # Build the lane-dense LHS (tm, K_p): kh*kw shifted windows side by
        # side along lanes, zero-padded up to K_p.
        pieces = [xwin[s:s + tm, :] for s in shifts]
        if k_zero:
            pieces.append(jnp.zeros((tm, k_zero), jnp.bfloat16))
        lhs = pieces[0] if len(pieces) == 1 else jnp.concatenate(pieces, axis=1)
        acc = jnp.dot(lhs, w_ref[...], preferred_element_type=jnp.float32)
        o_ref[...] = jnp.maximum(acc + b_ref[...], 0.0).astype(o_ref.dtype)

    def _ovl_spec(j):
        r = tm // ovl
        return pl.BlockSpec((ovl, cin_p), lambda i, j=j, r=r: ((i + 1) * r + j, 0))

    in_specs = ([pl.BlockSpec((tm, cin_p), lambda i: (i, 0))]
                + [_ovl_spec(j) for j in range(n_ovl)]
                + [pl.BlockSpec((k_p, cout_p), lambda i: (0, 0)),
                   pl.BlockSpec((1, cout_p), lambda i: (0, 0))])

    out_flat = pl.pallas_call(
        kernel_fn,
        out_shape=jax.ShapeDtypeStruct((m_pad, cout_p), jnp.bfloat16),
        grid=(gm,),
        in_specs=in_specs,
        out_specs=pl.BlockSpec((tm, cout_p), lambda i: (i, 0)),
        compiler_params=pltpu.CompilerParams(
            dimension_semantics=("parallel",)),
    )(*([xf] * (1 + n_ovl)), w_t, bias_p)

    # ---- glue: drop padding, keep valid (and strided) anchors, back to NCHW --
    out_flat = out_flat[:m_valid, :cout]
    out = out_flat.reshape(n, hp, wp, cout)
    out = out[:, :(ho - 1) * stride + 1:stride,
              :(wo - 1) * stride + 1:stride, :]
    return jnp.transpose(out, (0, 3, 1, 2)).astype(x_nchw.dtype)


# ---------------------------------------------------------------------------
# Pure-JAX reference (lax.conv) for correctness check.
# ---------------------------------------------------------------------------
def reference_forward(x_nchw, conv_w, conv_b, bn_gamma, bn_beta, bn_mean,
                      bn_var, *, kernel, stride, padding, eps=1e-5):
    y = lax.conv_general_dilated(
        x_nchw, conv_w,
        window_strides=(stride, stride),
        padding=[(padding, padding), (padding, padding)],
        dimension_numbers=("NCHW", "OIHW", "NCHW"))
    y = y + conv_b.reshape(1, -1, 1, 1)
    inv_std = 1.0 / jnp.sqrt(bn_var + eps)
    y = (y - bn_mean.reshape(1, -1, 1, 1)) * (bn_gamma * inv_std).reshape(
        1, -1, 1, 1) + bn_beta.reshape(1, -1, 1, 1)
    return jnp.maximum(y, 0.0)


if __name__ == "__main__":
    # Module config: ConvolutionBlock(ch_in=4, ch_out=8, kernel=3, stride=1)
    ch_in, ch_out, kernel, stride = 4, 8, 3, 1
    padding = calc_padding_size(kernel)            # -> 1
    N, H, W = 2, 16, 16

    key = jax.random.PRNGKey(0)
    k_x, k_w, k_b, k_g, k_be, k_m, k_v = jax.random.split(key, 7)

    x = jax.random.normal(k_x, (N, ch_in, H, W), dtype=jnp.float32)
    conv_w = 0.1 * jax.random.normal(k_w, (ch_out, ch_in, kernel, kernel),
                                     dtype=jnp.float32)
    conv_b = 0.1 * jax.random.normal(k_b, (ch_out,), dtype=jnp.float32)
    bn_gamma = 1.0 + 0.1 * jax.random.normal(k_g, (ch_out,), dtype=jnp.float32)
    bn_beta = 0.1 * jax.random.normal(k_be, (ch_out,), dtype=jnp.float32)
    bn_mean = 0.1 * jax.random.normal(k_m, (ch_out,), dtype=jnp.float32)
    bn_var = jnp.abs(jax.random.normal(k_v, (ch_out,), dtype=jnp.float32)) + 0.5

    out = convolution_block_forward(
        x, conv_w, conv_b, bn_gamma, bn_beta, bn_mean, bn_var,
        kernel=kernel, stride=stride, padding=padding)
    out = jax.block_until_ready(out)

    ref = reference_forward(
        x, conv_w, conv_b, bn_gamma, bn_beta, bn_mean, bn_var,
        kernel=kernel, stride=stride, padding=padding)
    ref = jax.block_until_ready(ref)

    assert out.shape == (N, ch_out, H, W), out.shape
    # bf16 activations/weights AND bf16 kernel output (f32 accumulation),
    # so compare against the f32 reference with a magnitude-aware tolerance.
    max_err = float(jnp.max(jnp.abs(out - ref)))
    ref_scale = float(jnp.max(jnp.abs(ref)))
    assert max_err <= 5e-2 + 2e-2 * ref_scale, (max_err, ref_scale)

    print("KERNEL_OK")
</pallas_src>

<mosaic_0001>
module attributes {stable_mosaic.version = 11 : i64} {
  func.func @kernel_fn(%arg0: i32, %arg1: memref<128x8xbf16, #tpu.memory_space<vmem>>, %arg2: memref<64x8xbf16, #tpu.memory_space<vmem>>, %arg3: memref<128x128xbf16, #tpu.memory_space<vmem>>, %arg4: memref<1x128xf32, #tpu.memory_space<vmem>>, %arg5: memref<128x128xbf16, #tpu.memory_space<vmem>>) attributes {dimension_semantics = [#tpu.dimension_semantics<parallel>], iteration_bounds = array<i64: 6>, scalar_prefetch = 0 : i64, scratch_operands = 0 : i64, tpu.core_type = #tpu.core_type<tc>, window_params = [{transform_indices = @transform_0, window_bounds = array<i64: 128, 8>}, {transform_indices = @transform_1, window_bounds = array<i64: 64, 8>}, {pipeline_mode = #tpu.pipeline_mode<synchronous>, transform_indices = @transform_2, window_bounds = array<i64: 128, 128>}, {pipeline_mode = #tpu.pipeline_mode<synchronous>, transform_indices = @transform_3, window_bounds = array<i64: 1, 128>}, {transform_indices = @transform_4, window_bounds = array<i64: 128, 128>}]} {
    %c0 = arith.constant 0 : index
    %c0_0 = arith.constant 0 : index
    %0 = vector.load %arg1[%c0, %c0_0] : memref<128x8xbf16, #tpu.memory_space<vmem>>, vector<128x8xbf16>
    %c0_1 = arith.constant 0 : index
    %c0_2 = arith.constant 0 : index
    %1 = vector.load %arg2[%c0_1, %c0_2] : memref<64x8xbf16, #tpu.memory_space<vmem>>, vector<64x8xbf16>
    %2 = tpu.concatenate %0, %1 in 0 : vector<128x8xbf16>, vector<64x8xbf16> -> vector<192x8xbf16>
    %3 = vector.extract_strided_slice %2 {offsets = [0, 0], sizes = [128, 8], strides = [1, 1]} : vector<192x8xbf16> to vector<128x8xbf16>
    %4 = vector.extract_strided_slice %2 {offsets = [1, 0], sizes = [128, 8], strides = [1, 1]} : vector<192x8xbf16> to vector<128x8xbf16>
    %5 = vector.extract_strided_slice %2 {offsets = [2, 0], sizes = [128, 8], strides = [1, 1]} : vector<192x8xbf16> to vector<128x8xbf16>
    %6 = vector.extract_strided_slice %2 {offsets = [18, 0], sizes = [128, 8], strides = [1, 1]} : vector<192x8xbf16> to vector<128x8xbf16>
    %7 = vector.extract_strided_slice %2 {offsets = [19, 0], sizes = [128, 8], strides = [1, 1]} : vector<192x8xbf16> to vector<128x8xbf16>
    %8 = vector.extract_strided_slice %2 {offsets = [20, 0], sizes = [128, 8], strides = [1, 1]} : vector<192x8xbf16> to vector<128x8xbf16>
    %9 = vector.extract_strided_slice %2 {offsets = [36, 0], sizes = [128, 8], strides = [1, 1]} : vector<192x8xbf16> to vector<128x8xbf16>
    %10 = vector.extract_strided_slice %2 {offsets = [37, 0], sizes = [128, 8], strides = [1, 1]} : vector<192x8xbf16> to vector<128x8xbf16>
    %11 = vector.extract_strided_slice %2 {offsets = [38, 0], sizes = [128, 8], strides = [1, 1]} : vector<192x8xbf16> to vector<128x8xbf16>
    %cst = arith.constant 0.000000e+00 : bf16
    %12 = vector.broadcast %cst : bf16 to vector<128x56xbf16>
    %13 = tpu.concatenate %3, %4, %5, %6, %7, %8, %9, %10, %11, %12 in 1 : vector<128x8xbf16>, vector<128x8xbf16>, vector<128x8xbf16>, vector<128x8xbf16>, vector<128x8xbf16>, vector<128x8xbf16>, vector<128x8xbf16>, vector<128x8xbf16>, vector<128x8xbf16>, vector<128x56xbf16> -> vector<128x128xbf16>
    %c0_3 = arith.constant 0 : index
    %c0_4 = arith.constant 0 : index
    %14 = vector.load %arg3[%c0_3, %c0_4] : memref<128x128xbf16, #tpu.memory_space<vmem>>, vector<128x128xbf16>
    %cst_5 = arith.constant dense<0.000000e+00> : vector<128x128xf32>
    %15 = tpu.matmul %13, %14, %cst_5 {dimension_numbers = #tpu.dot_dimension_numbers<[1], [0], [0], [1], [0, 0, 1, 1], [], []>} : vector<128x128xbf16>, vector<128x128xbf16>, vector<128x128xf32> -> vector<128x128xf32>
    %c0_6 = arith.constant 0 : index
    %c0_7 = arith.constant 0 : index
    %16 = vector.load %arg4[%c0_6, %c0_7] : memref<1x128xf32, #tpu.memory_space<vmem>>, vector<1x128xf32>
    %17 = vector.broadcast %16 : vector<1x128xf32> to vector<128x128xf32>
    %18 = arith.addf %15, %17 : vector<128x128xf32>
    %cst_8 = arith.constant 0.000000e+00 : f32
    %19 = vector.broadcast %cst_8 : f32 to vector<128x128xf32>
    %20 = arith.maximumf %18, %19 : vector<128x128xf32>
    %21 = arith.truncf %20 : vector<128x128xf32> to vector<128x128xbf16>
    %c0_9 = arith.constant 0 : index
    %c0_10 = arith.constant 0 : index
    %22 = vector.load %arg5[%c0_9, %c0_10] : memref<128x128xbf16, #tpu.memory_space<vmem>>, vector<128x128xbf16>
    tpu.vector_store %arg5[%c0_9, %c0_10], %21 {strides = array<i32>} : memref<128x128xbf16, #tpu.memory_space<vmem>>, vector<128x128xbf16>,
    return
  }
  func.func @transform_0(%arg0: i32) -> (i32, i32) {
    %c0_i32 = arith.constant 0 : i32
    %c0_i32_0 = arith.constant 0 : i32
    return %arg0, %c0_i32 : i32, i32
  }
  func.func @transform_1(%arg0: i32) -> (i32, i32) {
    %c1_i32 = arith.constant 1 : i32
    %0 = arith.addi %arg0, %c1_i32 : i32
    %c2_i32 = arith.constant 2 : i32
    %1 = arith.muli %0, %c2_i32 : i32
    %c0_i32 = arith.constant 0 : i32
    %2 = arith.addi %1, %c0_i32 : i32
    %c0_i32_0 = arith.constant 0 : i32
    %c0_i32_1 = arith.constant 0 : i32
    return %2, %c0_i32_0 : i32, i32
  }
  func.func @transform_2(%arg0: i32) -> (i32, i32) {
    %c0_i32 = arith.constant 0 : i32
    %c0_i32_0 = arith.constant 0 : i32
    %c0_i32_1 = arith.constant 0 : i32
    return %c0_i32, %c0_i32_0 : i32, i32
  }
  func.func @transform_3(%arg0: i32) -> (i32, i32) {
    %c0_i32 = arith.constant 0 : i32
    %c0_i32_0 = arith.constant 0 : i32
    %c0_i32_1 = arith.constant 0 : i32
    return %c0_i32, %c0_i32_0 : i32, i32
  }
  func.func @transform_4(%arg0: i32) -> (i32, i32) {
    %c0_i32 = arith.constant 0 : i32
    %c0_i32_0 = arith.constant 0 : i32
    return %arg0, %c0_i32 : i32, i32
  }
}

</mosaic_0001>

<llo_original>
// kernel: convolution_block_forward.1
$region0: #{convolution_block_forward.1}
  #allocation0 [shape = 'u32[]', space=smem, size = 0x4, offset = 0x4, fixed_abs, tag = 'smem constant byte address 0x4 - core index']
  #allocation1 [shape = 'u32[144,128]{1,0:T(1,128)}', space=vmem, size = 0x12000, scoped, tag = 'internal scratch']
  %s0 = inlined_call_operand.vmem [shape: bf16[832,8], index: 0, kind: input, shape index: {}, may-alias: {0,1}]
  %s1 = inlined_call_operand.vmem [shape: bf16[832,8], index: 1, kind: input, shape index: {}, may-alias: {0,1}]
  %s2 = inlined_call_operand.vmem [shape: bf16[128,128], index: 2, kind: input, shape index: {}]
  %s3 = inlined_call_operand.vmem [shape: f32[1,128], index: 3, kind: input, shape index: {}]
  %s4 = inlined_call_operand.vmem [shape: bf16[768,128], index: 4, kind: output, shape index: {}]
  %s5 = sld [smem:[#allocation0]]
  $region49: #{convolution_block_forward.1} parent=0
    _
  %s7 = ssub.s32 1, %s5
  %s8 = scalar_select 0, %s7, %s5
  loop: start=0, step=1, limit=8
  $region2: #{convolution_block_forward.1} parent=0 // loop_pre_header
    _
  $region3: #{convolution_block_forward.1} parent=0 // loop_header
    %s10 = sphi 0, %s14
    %p11 = scmp.ge.s32.totalorder %s10, 8
    %s20 = sphi 0, %s22
    %s23 = sphi 0, %s20
    %s24 = sphi 0, %s23
    %s40 = sphi 0, %s24
    %s50 = sphi 0, %s52
    %s53 = sphi 0, %s50
    %s54 = sphi 0, %s53
    %s70 = sphi 0, %s54
    %s74 = sphi 0, %s74
    %s76 = sphi 0, %s74
    %s77 = sphi 0, %s76
    %s91 = sphi 0, %s77
    %s95 = sphi 0, %s95
    %s97 = sphi 0, %s95
    %s98 = sphi 0, %s97
    %s112 = sphi 0, %s98
    %s118 = sphi 0, %s120
    %s121 = sphi 0, %s118
    %s122 = sphi 0, %s121
    %s138 = sphi 0, %s122
  $region4: #{convolution_block_forward.1} parent=0 // loop_header_branch
    %13 = sbr.rel (%p11) target = $region8
  $region5: #{convolution_block_forward.1} parent=0 // loop_body
    %s15 = ssub.s32 %s10, 1
    %s16 = ssub.s32 %s10, 2
    %s17 = sadd.s32 %s10, 1
    %s18 = ssub.s32 %s10, %s17
    %p19 = scmp.eq.s32.totalorder %s18, 0
    %s21 = sadd.s32 %s20, 1
    %s22 = scalar_select %p19, %s20, %s21
    %p25 = pneg %p19
    %p26 = scmp.eq.s32.totalorder %s10, 5
    %p27 = por %p25, %p26
    %p28 = scmp.ne.s32.totalorder %s20, %s23
    %p29 = scmp.eq.s32.totalorder %s10, 0
    %p30 = por %p28, %p29
    %p31 = scmp.ne.s32.totalorder %s20, %s23
    %p32 = scmp.eq.s32.totalorder %s15, 5
    %p33 = por %p31, %p32
    %p34 = scmp.ne.s32.totalorder %s23, %s24
    %p35 = scmp.eq.s32.totalorder %s15, 0
    %p36 = por %p34, %p35
    %p37 = scmp.ne.s32.totalorder %s23, %s24
    %p38 = scmp.eq.s32.totalorder %s16, 5
    %p39 = por %p37, %p38
    %p41 = scmp.ne.s32.totalorder %s24, %s40
    %p42 = scmp.eq.s32.totalorder %s16, 0
    %p43 = por %p41, %p42
    %s44 = sadd.s32 %s10, 1
    %s45 = smul.u32 %s44, 2
    %s46 = sadd.s32 %s17, 1
    %s47 = smul.u32 %s46, 2
    %s48 = ssub.s32 %s45, %s47
    %p49 = scmp.eq.s32.totalorder %s48, 0
    %s51 = sadd.s32 %s50, 1
    %s52 = scalar_select %p49, %s50, %s51
    %p55 = pneg %p49
    %p56 = scmp.eq.s32.totalorder %s10, 5
    %p57 = por %p55, %p56
    %p58 = scmp.ne.s32.totalorder %s50, %s53
    %p59 = scmp.eq.s32.totalorder %s10, 0
    %p60 = por %p58, %p59
    %p61 = scmp.ne.s32.totalorder %s50, %s53
    %p62 = scmp.eq.s32.totalorder %s15, 5
    %p63 = por %p61, %p62
    %p64 = scmp.ne.s32.totalorder %s53, %s54
    %p65 = scmp.eq.s32.totalorder %s15, 0
    %p66 = por %p64, %p65
    %p67 = scmp.ne.s32.totalorder %s53, %s54
    %p68 = scmp.eq.s32.totalorder %s16, 5
    %p69 = por %p67, %p68
    %p71 = scmp.ne.s32.totalorder %s54, %s70
    %p72 = scmp.eq.s32.totalorder %s16, 0
    %p73 = por %p71, %p72
    %s75 = sadd.s32 %s74, 1
    %p78 = scmp.eq.s32.totalorder %s10, 5
    %p79 = scmp.ne.s32.totalorder %s74, %s76
    %p80 = scmp.eq.s32.totalorder %s10, 0
    %p81 = por %p79, %p80
    %p82 = scmp.ne.s32.totalorder %s74, %s76
    %p83 = scmp.eq.s32.totalorder %s15, 5
    %p84 = por %p82, %p83
    %p85 = scmp.ne.s32.totalorder %s76, %s77
    %p86 = scmp.eq.s32.totalorder %s15, 0
    %p87 = por %p85, %p86
    %p88 = scmp.ne.s32.totalorder %s76, %s77
    %p89 = scmp.eq.s32.totalorder %s16, 5
    %p90 = por %p88, %p89
    %p92 = scmp.ne.s32.totalorder %s77, %s91
    %p93 = scmp.eq.s32.totalorder %s16, 0
    %p94 = por %p92, %p93
    %s96 = sadd.s32 %s95, 1
    %p99 = scmp.eq.s32.totalorder %s10, 5
    %p100 = scmp.ne.s32.totalorder %s95, %s97
    %p101 = scmp.eq.s32.totalorder %s10, 0
    %p102 = por %p100, %p101
    %p103 = scmp.ne.s32.totalorder %s95, %s97
    %p104 = scmp.eq.s32.totalorder %s15, 5
    %p105 = por %p103, %p104
    %p106 = scmp.ne.s32.totalorder %s97, %s98
    %p107 = scmp.eq.s32.totalorder %s15, 0
    %p108 = por %p106, %p107
    %p109 = scmp.ne.s32.totalorder %s97, %s98
    %p110 = scmp.eq.s32.totalorder %s16, 5
    %p111 = por %p109, %p110
    %p113 = scmp.ne.s32.totalorder %s98, %s112
    %p114 = scmp.eq.s32.totalorder %s16, 0
    %p115 = por %p113, %p114
    %s116 = ssub.s32 %s10, %s17
    %p117 = scmp.eq.s32.totalorder %s116, 0
    %s119 = sadd.s32 %s118, 1
    %s120 = scalar_select %p117, %s118, %s119
    %p123 = pneg %p117
    %p124 = scmp.eq.s32.totalorder %s10, 5
    %p125 = por %p123, %p124
    %p126 = scmp.ne.s32.totalorder %s118, %s121
    %p127 = scmp.eq.s32.totalorder %s10, 0
    %p128 = por %p126, %p127
    %p129 = scmp.ne.s32.totalorder %s118, %s121
    %p130 = scmp.eq.s32.totalorder %s15, 5
    %p131 = por %p129, %p130
    %p132 = scmp.ne.s32.totalorder %s121, %s122
    %p133 = scmp.eq.s32.totalorder %s15, 0
    %p134 = por %p132, %p133
    %p135 = scmp.ne.s32.totalorder %s121, %s122
    %p136 = scmp.eq.s32.totalorder %s16, 5
    %p137 = por %p135, %p136
    %p139 = scmp.ne.s32.totalorder %s122, %s138
    %p140 = scmp.eq.s32.totalorder %s16, 0
    %p141 = por %p139, %p140
    %p142 = scmp.le.s32.totalorder 1, %s10
    %p143 = scmp.lt.s32.totalorder %s10, 7
    %p144 = pnand %p142, %p143
    %p145 = pneg %p144
    // Predicated region
    $region9: #{convolution_block_forward.1} parent=5 // pred_check
      _
    $region10: #{convolution_block_forward.1} parent=5 // pred_check_branch
      %147 = sbr.rel (%p144) target = $region12
    $region11: #{convolution_block_forward.1} parent=5 // pred_region
      %s148 = ssub.s32 %s10, 1
      // Predicated region
      $region13: #{convolution_block_forward.1} parent=11 // pred_check
        %p149 = pneg %p87
      $region14: #{convolution_block_forward.1} parent=11 // pred_check_branch
        %151 = sbr.rel (%p149) target = $region16
      $region15: #{convolution_block_forward.1} parent=11 // pred_region
        _
      $region16: #{convolution_block_forward.1} parent=11 // pred_fallthru
        _
      // Predicated region
      $region17: #{convolution_block_forward.1} parent=11 // pred_check
        %p152 = pneg %p108
      $region18: #{convolution_block_forward.1} parent=11 // pred_check_branch
        %154 = sbr.rel (%p152) target = $region20
      $region19: #{convolution_block_forward.1} parent=11 // pred_region
        _
      $region20: #{convolution_block_forward.1} parent=11 // pred_fallthru
        _
    $region12: #{convolution_block_forward.1} parent=5 // pred_fallthru
      _
    %p155 = scmp.lt.s32.totalorder %s10, 6
    // Predicated region
    $region21: #{convolution_block_forward.1} parent=5 // pred_check
      %p156 = pneg %p155
    $region22: #{convolution_block_forward.1} parent=5 // pred_check_branch
      %158 = sbr.rel (%p156) target = $region24
    $region23: #{convolution_block_forward.1} parent=5 // pred_region
      // Predicated region
      $region25: #{convolution_block_forward.1} parent=23 // pred_check
        %p159 = pneg %p30
      $region26: #{convolution_block_forward.1} parent=23 // pred_check_branch
        %161 = sbr.rel (%p159) target = $region28
      $region27: #{convolution_block_forward.1} parent=23 // pred_region
        %s162 = smul.u32 16, %s10
        %s163 = ssub.s32 104, %s162
        %p164 = scmp.lt.s32.totalorder %s163, 16
        %s165 = scalar_select %p164, %s163, 16
        %s166 = smul.u32 64, %s165
        %p167 = scmp.lt.s32.totalorder %s162, 103
        %s168 = scalar_select %p167, %s162, 103
        %s169 = smul.addr %s168, 4
        %s170 = scalar_lea.vmem %s0, %s169
        %s171 = smul.u32 16, %s10
        %s172 = ssub.s32 104, %s171
        %p173 = scmp.lt.s32.totalorder %s172, 16
        %s174 = scalar_select %p173, %s172, 16
        %s175 = smul.u32 64, %s174
      $region28: #{convolution_block_forward.1} parent=23 // pred_fallthru
        _
      // Predicated region
      $region29: #{convolution_block_forward.1} parent=23 // pred_check
        %p176 = pneg %p60
      $region30: #{convolution_block_forward.1} parent=23 // pred_check_branch
        %178 = sbr.rel (%p176) target = $region32
      $region31: #{convolution_block_forward.1} parent=23 // pred_region
        %s179 = sadd.s32 %s10, 1
        %s180 = smul.u32 %s179, 2
        %s181 = smul.u32 8, %s180
        %p182 = scmp.lt.s32.totalorder %s181, 103
        %s183 = scalar_select %p182, %s181, 103
        %s184 = smul.addr %s183, 4
        %s185 = scalar_lea.vmem %s1, %s184
        %s186 = sadd.s32 %s10, 1
        %s187 = smul.u32 %s186, 2
        %s188 = smul.u32 8, %s187
      $region32: #{convolution_block_forward.1} parent=23 // pred_fallthru
        _
    $region24: #{convolution_block_forward.1} parent=5 // pred_fallthru
      _
    %p189 = scmp.le.s32.totalorder 1, %s10
    %p190 = scmp.lt.s32.totalorder %s10, 7
    %p191 = pnand %p189, %p190
    %p192 = pneg %p191
    // Predicated region
    $region33: #{convolution_block_forward.1} parent=5 // pred_check
      _
    $region34: #{convolution_block_forward.1} parent=5 // pred_check_branch
      %194 = sbr.rel (%p191) target = $region36
    $region35: #{convolution_block_forward.1} parent=5 // pred_region
      %s195 = ssub.s32 %s10, 1
      %s196 = smul.u32 16, %s15
      %s197 = ssub.s32 104, %s196
      %p198 = scmp.lt.s32.totalorder %s197, 16
      %s199 = scalar_select %p198, %s197, 16
      %s200 = smul.u32 64, %s199
      %p201 = scmp.lt.s32.totalorder %s196, 103
      %s202 = scalar_select %p201, %s196, 103
      %s203 = smul.addr %s202, 4
      %s204 = scalar_lea.vmem %s0, %s203
      %p205 = pneg %p36
      %p206 = pneg %p33
      %s207 = sadd.s32 %s15, 1
      %s208 = smul.u32 %s207, 2
      %s209 = smul.u32 8, %s208
      %p210 = scmp.lt.s32.totalorder %s209, 103
      %s211 = scalar_select %p210, %s209, 103
      %s212 = smul.addr %s211, 4
      %s213 = scalar_lea.vmem %s1, %s212
      %p214 = pneg %p66
      %p215 = pneg %p63
      %p216 = pneg %p87
      %p217 = pneg %p84
      %p218 = pneg %p108
      %p219 = pneg %p105
      %p220 = pneg %p134
      %p221 = pneg %p131
      %s222 = smul.u32 16, %s15
      %p223 = scmp.lt.s32.totalorder %s222, 95
      %s224 = scalar_select %p223, %s222, 95
      %s225 = smul.addr %s224, 4
      %s226 = scalar_lea.vmem %s4, %s225
      %s227 = smul.u32 16, %s15
      %s228 = ssub.s32 104, %s227
      %p229 = scmp.lt.s32.totalorder %s228, 16
      %s230 = scalar_select %p229, %s228, 16
      %s231 = smul.u32 64, %s230
      %p232 = scmp.lt.s32.totalorder %s227, 103
      %s233 = scalar_select %p232, %s227, 103
      %s234 = smul.addr %s233, 4
      %s235 = scalar_lea.vmem %s0, %s234
      %s236 = smul.u32 16, %s15
      %s237 = ssub.s32 104, %s236
      %p238 = scmp.lt.s32.totalorder %s237, 16
      %s239 = scalar_select %p238, %s237, 16
      %s240 = smul.u32 64, %s239
      %s241 = sadd.s32 %s15, 1
      %s242 = smul.u32 %s241, 2
      %s243 = smul.u32 8, %s242
      %p244 = scmp.lt.s32.totalorder %s243, 103
      %s245 = scalar_select %p244, %s243, 103
      %s246 = smul.addr %s245, 4
      %s247 = scalar_lea.vmem %s1, %s246
      %s248 = sadd.s32 %s15, 1
      %s249 = smul.u32 %s248, 2
      %s250 = smul.u32 8, %s249
      %s251 = smul.u32 16, %s15
      %p252 = scmp.lt.s32.totalorder %s251, 95
      %s253 = scalar_select %p252, %s251, 95
      %s254 = smul.addr %s253, 4
      %s255 = scalar_lea.vmem %s4, %s254
      %s256 = smul.u32 16, %s15
      %v258 = vld [vmem:[%s235] sm:$0xf]
      %v259 = vld [vmem:[%s235 + $0x4] sm:$0xf]
      %v260 = vld [vmem:[%s235 + $0x8] sm:$0xf]
      %v261 = vld [vmem:[%s235 + $0xc] sm:$0xf]
      %v262 = vld [vmem:[%s235 + $0x10] sm:$0xf]
      %v263 = vld [vmem:[%s235 + $0x14] sm:$0xf]
      %v264 = vld [vmem:[%s235 + $0x18] sm:$0xf]
      %v265 = vld [vmem:[%s235 + $0x1c] sm:$0xf]
      %v266 = vld [vmem:[%s235 + $0x20] sm:$0xf]
      %v267 = vld [vmem:[%s235 + $0x24] sm:$0xf]
      %v268 = vld [vmem:[%s235 + $0x28] sm:$0xf]
      %v269 = vld [vmem:[%s235 + $0x2c] sm:$0xf]
      %v270 = vld [vmem:[%s235 + $0x30] sm:$0xf]
      %v271 = vld [vmem:[%s235 + $0x34] sm:$0xf]
      %v272 = vld [vmem:[%s235 + $0x38] sm:$0xf]
      %v273 = vld [vmem:[%s235 + $0x3c] sm:$0xf]
      %v274 = vld [vmem:[%s247] sm:$0xf]
      %v275 = vld [vmem:[%s247 + $0x4] sm:$0xf]
      %v276 = vld [vmem:[%s247 + $0x8] sm:$0xf]
      %v277 = vld [vmem:[%s247 + $0xc] sm:$0xf]
      %v278 = vld [vmem:[%s247 + $0x10] sm:$0xf]
      %v279 = vld [vmem:[%s247 + $0x14] sm:$0xf]
      %v296 = vunpack.c.l.b16 %v258
      %v297 = vunpack.c.l.b16 %v259
      %v298 = vunpack.c.l.b16 %v260
      %v299 = vunpack.c.l.b16 %v261
      %v300 = vunpack.c.l.b16 %v262
      %v301 = vunpack.c.l.b16 %v263
      %v302 = vunpack.c.l.b16 %v264
      %v303 = vunpack.c.l.b16 %v265
      %v304 = vunpack.c.l.b16 %v266
      %v305 = vunpack.c.l.b16 %v267
      %v306 = vunpack.c.l.b16 %v268
      %v307 = vunpack.c.l.b16 %v269
      %v308 = vunpack.c.l.b16 %v270
      %v309 = vunpack.c.l.b16 %v271
      %v310 = vunpack.c.l.b16 %v272
      %v311 = vunpack.c.l.b16 %v273
      %v312 = vpack.c.b16 %v297, %v296
      %v313 = vpack.c.b16 %v299, %v298
      %v314 = vpack.c.b16 %v301, %v300
      %v315 = vpack.c.b16 %v303, %v302
      %v316 = vpack.c.b16 %v305, %v304
      %v317 = vpack.c.b16 %v307, %v306
      %v318 = vpack.c.b16 %v309, %v308
      %v319 = vpack.c.b16 %v311, %v310
      %v326 = vunpack.c.l.b16 %v274
      %v327 = vunpack.c.l.b16 %v275
      %v328 = vunpack.c.l.b16 %v276
      %v329 = vunpack.c.l.b16 %v277
      %v330 = vunpack.c.l.b16 %v278
      %v331 = vunpack.c.l.b16 %v279
      %v332 = vpack.c.b16 %v327, %v326
      %v333 = vpack.c.b16 %v329, %v328
      %v334 = vpack.c.b16 %v331, %v330
      %vm335 = vsmask.f32 7424
      %v337 = vshrl.u32 %v312, 16
      %v339 = vshll.u32 %v312, 16
      %v341 = vrot.slane %v339, 1
      %v342 = vor.u32 %v337, %v341
      %v344 = vshll.u32 %v313, 16
      %v346 = vrot.slane %v344, 1
      %v347 = vsel %vm335, %v342, %v346
      %v348 = vshrl.u32 %v313, 16
      %v350 = vor.u32 %v348, %v346
      %v352 = vshll.u32 %v314, 16
      %v354 = vrot.slane %v352, 1
      %v355 = vsel %vm335, %v350, %v354
      %v356 = vshrl.u32 %v314, 16
      %v358 = vor.u32 %v356, %v354
      %v360 = vshll.u32 %v315, 16
      %v362 = vrot.slane %v360, 1
      %v363 = vsel %vm335, %v358, %v362
      %v364 = vshrl.u32 %v315, 16
      %v366 = vor.u32 %v364, %v362
      %v368 = vshll.u32 %v316, 16
      %v370 = vrot.slane %v368, 1
      %v371 = vsel %vm335, %v366, %v370
      %v372 = vshrl.u32 %v316, 16
      %v374 = vor.u32 %v372, %v370
      %v376 = vshll.u32 %v317, 16
      %v378 = vrot.slane %v376, 1
      %v379 = vsel %vm335, %v374, %v378
      %v380 = vshrl.u32 %v317, 16
      %v382 = vor.u32 %v380, %v378
      %v384 = vshll.u32 %v318, 16
      %v386 = vrot.slane %v384, 1
      %v387 = vsel %vm335, %v382, %v386
      %v388 = vshrl.u32 %v318, 16
      %v390 = vor.u32 %v388, %v386
      %v392 = vshll.u32 %v319, 16
      %v394 = vrot.slane %v392, 1
      %v395 = vsel %vm335, %v390, %v394
      %v396 = vshrl.u32 %v319, 16
      %v398 = vor.u32 %v396, %v394
      %v400 = vshll.u32 %v332, 16
      %v402 = vrot.slane %v400, 1
      %v403 = vsel %vm335, %v398, %v402
      %404 = vrot.lane.b32.xlu0 %v347, 8
      %v405 = vpop.permute.xlu0 %404
      %406 = vrot.lane.b32.xlu0 %v355, 8
      %v407 = vpop.permute.xlu0 %406
      %408 = vrot.lane.b32.xlu0 %v363, 8
      %v409 = vpop.permute.xlu0 %408
      %410 = vrot.lane.b32.xlu0 %v371, 8
      %v411 = vpop.permute.xlu0 %410
      %412 = vrot.lane.b32.xlu0 %v379, 8
      %v413 = vpop.permute.xlu0 %412
      %414 = vrot.lane.b32.xlu0 %v387, 8
      %v415 = vpop.permute.xlu0 %414
      %416 = vrot.lane.b32.xlu0 %v395, 8
      %v417 = vpop.permute.xlu0 %416
      %418 = vrot.lane.b32.xlu0 %v403, 8
      %v419 = vpop.permute.xlu0 %418
      %vm420 = vcmask 1046528
      %v421 = vrot.slane %v312, 1
      %v422 = vrot.slane %v313, 1
      %v423 = vsel %vm420, %v421, %v422
      %v424 = vrot.slane %v314, 1
      %v425 = vsel %vm420, %v422, %v424
      %v426 = vrot.slane %v315, 1
      %v427 = vsel %vm420, %v424, %v426
      %v428 = vrot.slane %v316, 1
      %v429 = vsel %vm420, %v426, %v428
      %v430 = vrot.slane %v317, 1
      %v431 = vsel %vm420, %v428, %v430
      %v432 = vrot.slane %v318, 1
      %v433 = vsel %vm420, %v430, %v432
      %v434 = vrot.slane %v319, 1
      %v435 = vsel %vm420, %v432, %v434
      %v436 = vrot.slane %v332, 1
      %v437 = vsel %vm420, %v434, %v436
      %438 = vrot.lane.b32.xlu0 %v423, 16
      %v439 = vpop.permute.xlu0 %438
      %440 = vrot.lane.b32.xlu0 %v425, 16
      %v441 = vpop.permute.xlu0 %440
      %442 = vrot.lane.b32.xlu0 %v427, 16
      %v443 = vpop.permute.xlu0 %442
      %444 = vrot.lane.b32.xlu0 %v429, 16
      %v445 = vpop.permute.xlu0 %444
      %446 = vrot.lane.b32.xlu0 %v431, 16
      %v447 = vpop.permute.xlu0 %446
      %448 = vrot.lane.b32.xlu0 %v433, 16
      %v449 = vpop.permute.xlu0 %448
      %450 = vrot.lane.b32.xlu0 %v435, 16
      %v451 = vpop.permute.xlu0 %450
      %452 = vrot.lane.b32.xlu0 %v437, 16
      %v453 = vpop.permute.xlu0 %452
      %v454 = vrot.slane %v333, 1
      %v455 = vsel %vm420, %v436, %v454
      %456 = vrot.lane.b32.xlu0 %v425, 24
      %v457 = vpop.permute.xlu0 %456
      %458 = vrot.lane.b32.xlu0 %v427, 24
      %v459 = vpop.permute.xlu0 %458
      %460 = vrot.lane.b32.xlu0 %v429, 24
      %v461 = vpop.permute.xlu0 %460
      %462 = vrot.lane.b32.xlu0 %v431, 24
      %v463 = vpop.permute.xlu0 %462
      %464 = vrot.lane.b32.xlu0 %v433, 24
      %v465 = vpop.permute.xlu0 %464
      %466 = vrot.lane.b32.xlu0 %v435, 24
      %v467 = vpop.permute.xlu0 %466
      %468 = vrot.lane.b32.xlu0 %v437, 24
      %v469 = vpop.permute.xlu0 %468
      %470 = vrot.lane.b32.xlu0 %v455, 24
      %v471 = vpop.permute.xlu0 %470
      %vm472 = vsmask.f32 6400
      %v473 = vrot.slane %v348, 1
      %v474 = vrot.slane %v344, 2
      %v475 = vor.u32 %v473, %v474
      %v476 = vrot.slane %v356, 1
      %v477 = vrot.slane %v352, 2
      %v478 = vor.u32 %v476, %v477
      %v479 = vsel %vm472, %v475, %v478
      %v480 = vrot.slane %v364, 1
      %v481 = vrot.slane %v360, 2
      %v482 = vor.u32 %v480, %v481
      %v483 = vsel %vm472, %v478, %v482
      %v484 = vrot.slane %v372, 1
      %v485 = vrot.slane %v368, 2
      %v486 = vor.u32 %v484, %v485
      %v487 = vsel %vm472, %v482, %v486
      %v488 = vrot.slane %v380, 1
      %v489 = vrot.slane %v376, 2
      %v490 = vor.u32 %v488, %v489
      %v491 = vsel %vm472, %v486, %v490
      %v492 = vrot.slane %v388, 1
      %v493 = vrot.slane %v384, 2
      %v494 = vor.u32 %v492, %v493
      %v495 = vsel %vm472, %v490, %v494
      %v496 = vrot.slane %v396, 1
      %v497 = vrot.slane %v392, 2
      %v498 = vor.u32 %v496, %v497
      %v499 = vsel %vm472, %v494, %v498
      %v500 = vshrl.u32 %v332, 16
      %v502 = vrot.slane %v500, 1
      %v503 = vrot.slane %v400, 2
      %v504 = vor.u32 %v502, %v503
      %v505 = vsel %vm472, %v498, %v504
      %v507 = vshrl.u32 %v333, 16
      %v509 = vrot.slane %v507, 1
      %v510 = vshll.u32 %v333, 16
      %v512 = vrot.slane %v510, 2
      %v513 = vor.u32 %v509, %v512
      %v514 = vsel %vm472, %v504, %v513
      %515 = vrot.lane.b32.xlu0 %v479, 32
      %v516 = vpop.permute.xlu0 %515
      %517 = vrot.lane.b32.xlu0 %v483, 32
      %v518 = vpop.permute.xlu0 %517
      %519 = vrot.lane.b32.xlu0 %v487, 32
      %v520 = vpop.permute.xlu0 %519
      %521 = vrot.lane.b32.xlu0 %v491, 32
      %v522 = vpop.permute.xlu0 %521
      %523 = vrot.lane.b32.xlu0 %v495, 32
      %v524 = vpop.permute.xlu0 %523
      %525 = vrot.lane.b32.xlu0 %v499, 32
      %v526 = vpop.permute.xlu0 %525
      %527 = vrot.lane.b32.xlu0 %v505, 32
      %v528 = vpop.permute.xlu0 %527
      %529 = vrot.lane.b32.xlu0 %v514, 32
      %v530 = vpop.permute.xlu0 %529
      %vm531 = vcmask 1045504
      %v532 = vrot.slane %v313, 2
      %v533 = vrot.slane %v314, 2
      %v534 = vsel %vm531, %v532, %v533
      %v535 = vrot.slane %v315, 2
      %v536 = vsel %vm531, %v533, %v535
      %v537 = vrot.slane %v316, 2
      %v538 = vsel %vm531, %v535, %v537
      %v539 = vrot.slane %v317, 2
      %v540 = vsel %vm531, %v537, %v539
      %v541 = vrot.slane %v318, 2
      %v542 = vsel %vm531, %v539, %v541
      %v543 = vrot.slane %v319, 2
      %v544 = vsel %vm531, %v541, %v543
      %v545 = vrot.slane %v332, 2
      %v546 = vsel %vm531, %v543, %v545
      %v547 = vrot.slane %v333, 2
      %v548 = vsel %vm531, %v545, %v547
      %549 = vrot.lane.b32.xlu0 %v534, 40
      %v550 = vpop.permute.xlu0 %549
      %551 = vrot.lane.b32.xlu0 %v536, 40
      %v552 = vpop.permute.xlu0 %551
      %553 = vrot.lane.b32.xlu0 %v538, 40
      %v554 = vpop.permute.xlu0 %553
      %555 = vrot.lane.b32.xlu0 %v540, 40
      %v556 = vpop.permute.xlu0 %555
      %557 = vrot.lane.b32.xlu0 %v542, 40
      %v558 = vpop.permute.xlu0 %557
      %559 = vrot.lane.b32.xlu0 %v544, 40
      %v560 = vpop.permute.xlu0 %559
      %561 = vrot.lane.b32.xlu0 %v546, 40
      %v562 = vpop.permute.xlu0 %561
      %563 = vrot.lane.b32.xlu0 %v548, 40
      %v564 = vpop.permute.xlu0 %563
      %v565 = vrot.slane %v334, 2
      %v566 = vsel %vm531, %v547, %v565
      %567 = vrot.lane.b32.xlu0 %v536, 48
      %v568 = vpop.permute.xlu0 %567
      %569 = vrot.lane.b32.xlu0 %v538, 48
      %v570 = vpop.permute.xlu0 %569
      %571 = vrot.lane.b32.xlu0 %v540, 48
      %v572 = vpop.permute.xlu0 %571
      %573 = vrot.lane.b32.xlu0 %v542, 48
      %v574 = vpop.permute.xlu0 %573
      %575 = vrot.lane.b32.xlu0 %v544, 48
      %v576 = vpop.permute.xlu0 %575
      %577 = vrot.lane.b32.xlu0 %v546, 48
      %v578 = vpop.permute.xlu0 %577
      %579 = vrot.lane.b32.xlu0 %v548, 48
      %v580 = vpop.permute.xlu0 %579
      %581 = vrot.lane.b32.xlu0 %v566, 48
      %v582 = vpop.permute.xlu0 %581
      %vm583 = vsmask.f32 5376
      %v584 = vrot.slane %v356, 2
      %v585 = vrot.slane %v352, 3
      %v586 = vor.u32 %v584, %v585
      %v587 = vrot.slane %v364, 2
      %v588 = vrot.slane %v360, 3
      %v589 = vor.u32 %v587, %v588
      %v590 = vsel %vm583, %v586, %v589
      %v591 = vrot.slane %v372, 2
      %v592 = vrot.slane %v368, 3
      %v593 = vor.u32 %v591, %v592
      %v594 = vsel %vm583, %v589, %v593
      %v595 = vrot.slane %v380, 2
      %v596 = vrot.slane %v376, 3
      %v597 = vor.u32 %v595, %v596
      %v598 = vsel %vm583, %v593, %v597
      %v599 = vrot.slane %v388, 2
      %v600 = vrot.slane %v384, 3
      %v601 = vor.u32 %v599, %v600
      %v602 = vsel %vm583, %v597, %v601
      %v603 = vrot.slane %v396, 2
      %v604 = vrot.slane %v392, 3
      %v605 = vor.u32 %v603, %v604
      %v606 = vsel %vm583, %v601, %v605
      %v607 = vrot.slane %v500, 2
      %v608 = vrot.slane %v400, 3
      %v609 = vor.u32 %v607, %v608
      %v610 = vsel %vm583, %v605, %v609
      %v611 = vrot.slane %v507, 2
      %v612 = vrot.slane %v510, 3
      %v613 = vor.u32 %v611, %v612
      %v614 = vsel %vm583, %v609, %v613
      %v616 = vshrl.u32 %v334, 16
      %v618 = vrot.slane %v616, 2
      %v619 = vshll.u32 %v334, 16
      %v621 = vrot.slane %v619, 3
      %v622 = vor.u32 %v618, %v621
      %v623 = vsel %vm583, %v613, %v622
      %624 = vrot.lane.b32.xlu0 %v590, 56
      %v625 = vpop.permute.xlu0 %624
      %626 = vrot.lane.b32.xlu0 %v594, 56
      %v627 = vpop.permute.xlu0 %626
      %628 = vrot.lane.b32.xlu0 %v598, 56
      %v629 = vpop.permute.xlu0 %628
      %630 = vrot.lane.b32.xlu0 %v602, 56
      %v631 = vpop.permute.xlu0 %630
      %632 = vrot.lane.b32.xlu0 %v606, 56
      %v633 = vpop.permute.xlu0 %632
      %634 = vrot.lane.b32.xlu0 %v610, 56
      %v635 = vpop.permute.xlu0 %634
      %636 = vrot.lane.b32.xlu0 %v614, 56
      %v637 = vpop.permute.xlu0 %636
      %638 = vrot.lane.b32.xlu0 %v623, 56
      %v639 = vpop.permute.xlu0 %638
      %vm640 = vcmask 1044480
      %v641 = vrot.slane %v314, 3
      %v642 = vrot.slane %v315, 3
      %v643 = vsel %vm640, %v641, %v642
      %v644 = vrot.slane %v316, 3
      %v645 = vsel %vm640, %v642, %v644
      %v646 = vrot.slane %v317, 3
      %v647 = vsel %vm640, %v644, %v646
      %v648 = vrot.slane %v318, 3
      %v649 = vsel %vm640, %v646, %v648
      %v650 = vrot.slane %v319, 3
      %v651 = vsel %vm640, %v648, %v650
      %v652 = vrot.slane %v332, 3
      %v653 = vsel %vm640, %v650, %v652
      %v654 = vrot.slane %v333, 3
      %v655 = vsel %vm640, %v652, %v654
      %v656 = vrot.slane %v334, 3
      %v657 = vsel %vm640, %v654, %v656
      %658 = vrot.lane.b32.xlu0 %v643, 64
      %v659 = vpop.permute.xlu0 %658
      %660 = vrot.lane.b32.xlu0 %v645, 64
      %v661 = vpop.permute.xlu0 %660
      %662 = vrot.lane.b32.xlu0 %v647, 64
      %v663 = vpop.permute.xlu0 %662
      %664 = vrot.lane.b32.xlu0 %v649, 64
      %v665 = vpop.permute.xlu0 %664
      %666 = vrot.lane.b32.xlu0 %v651, 64
      %v667 = vpop.permute.xlu0 %666
      %668 = vrot.lane.b32.xlu0 %v653, 64
      %v669 = vpop.permute.xlu0 %668
      %670 = vrot.lane.b32.xlu0 %v655, 64
      %v671 = vpop.permute.xlu0 %670
      %672 = vrot.lane.b32.xlu0 %v657, 64
      %v673 = vpop.permute.xlu0 %672
      %vm674 = vcmask 64512
      %v676 = vsel %vm674, %v312, %v405
      %v678 = vsel %vm674, %v313, %v407
      %v680 = vsel %vm674, %v314, %v409
      %v682 = vsel %vm674, %v315, %v411
      %v684 = vsel %vm674, %v316, %v413
      %v686 = vsel %vm674, %v317, %v415
      %v688 = vsel %vm674, %v318, %v417
      %v690 = vsel %vm674, %v319, %v419
      %vm691 = vcmask 130048
      %v693 = vsel %vm691, %v676, %v439
      %v695 = vsel %vm691, %v678, %v441
      %v697 = vsel %vm691, %v680, %v443
      %v699 = vsel %vm691, %v682, %v445
      %v701 = vsel %vm691, %v684, %v447
      %v703 = vsel %vm691, %v686, %v449
      %v705 = vsel %vm691, %v688, %v451
      %v707 = vsel %vm691, %v690, %v453
      %vm708 = vcmask 195584
      %v710 = vsel %vm708, %v693, %v457
      %v712 = vsel %vm708, %v695, %v459
      %v714 = vsel %vm708, %v697, %v461
      %v716 = vsel %vm708, %v699, %v463
      %v718 = vsel %vm708, %v701, %v465
      %v720 = vsel %vm708, %v703, %v467
      %v722 = vsel %vm708, %v705, %v469
      %v724 = vsel %vm708, %v707, %v471
      %vm725 = vcmask 261120
      %v727 = vsel %vm725, %v710, %v516
      %v729 = vsel %vm725, %v712, %v518
      %v731 = vsel %vm725, %v714, %v520
      %v733 = vsel %vm725, %v716, %v522
      %v735 = vsel %vm725, %v718, %v524
      %v737 = vsel %vm725, %v720, %v526
      %v739 = vsel %vm725, %v722, %v528
      %v741 = vsel %vm725, %v724, %v530
      %vm742 = vcmask 326656
      %v744 = vsel %vm742, %v727, %v550
      %v746 = vsel %vm742, %v729, %v552
      %v748 = vsel %vm742, %v731, %v554
      %v750 = vsel %vm742, %v733, %v556
      %v752 = vsel %vm742, %v735, %v558
      %v754 = vsel %vm742, %v737, %v560
      %v756 = vsel %vm742, %v739, %v562
      %v758 = vsel %vm742, %v741, %v564
      %vm759 = vcmask 392192
      %v761 = vsel %vm759, %v744, %v568
      %v763 = vsel %vm759, %v746, %v570
      %v765 = vsel %vm759, %v748, %v572
      %v767 = vsel %vm759, %v750, %v574
      %v769 = vsel %vm759, %v752, %v576
      %v771 = vsel %vm759, %v754, %v578
      %v773 = vsel %vm759, %v756, %v580
      %v775 = vsel %vm759, %v758, %v582
      %vm776 = vcmask 457728
      %v778 = vsel %vm776, %v761, %v625
      %v780 = vsel %vm776, %v763, %v627
      %v782 = vsel %vm776, %v765, %v629
      %v784 = vsel %vm776, %v767, %v631
      %v786 = vsel %vm776, %v769, %v633
      %v788 = vsel %vm776, %v771, %v635
      %v790 = vsel %vm776, %v773, %v637
      %v792 = vsel %vm776, %v775, %v639
      %vm793 = vcmask 523264
      %v795 = vsel %vm793, %v778, %v659
      %v797 = vsel %vm793, %v780, %v661
      %v799 = vsel %vm793, %v782, %v663
      %v801 = vsel %vm793, %v784, %v665
      %v803 = vsel %vm793, %v786, %v667
      %v805 = vsel %vm793, %v788, %v669
      %v807 = vsel %vm793, %v790, %v671
      %v809 = vsel %vm793, %v792, %v673
      %vm810 = vcmask 588800
      %v812 = vsel %vm810, %v795, 0
      %v814 = vsel %vm810, %v797, 0
      %v816 = vsel %vm810, %v799, 0
      %v818 = vsel %vm810, %v801, 0
      %v820 = vsel %vm810, %v803, 0
      %v822 = vsel %vm810, %v805, 0
      %v824 = vsel %vm810, %v807, 0
      %v826 = vsel %vm810, %v809, 0
      %v828 = vld [vmem:[%s2] sm:$0xf]
      %v829 = vld [vmem:[%s2 + $0x4] sm:$0xf]
      %v830 = vld [vmem:[%s2 + $0x8] sm:$0xf]
      %v831 = vld [vmem:[%s2 + $0xc] sm:$0xf]
      %v832 = vld [vmem:[%s2 + $0x10] sm:$0xf]
      %v833 = vld [vmem:[%s2 + $0x14] sm:$0xf]
      %v834 = vld [vmem:[%s2 + $0x18] sm:$0xf]
      %v835 = vld [vmem:[%s2 + $0x1c] sm:$0xf]
      %v836 = vld [vmem:[%s2 + $0x20] sm:$0xf]
      %v837 = vld [vmem:[%s2 + $0x24] sm:$0xf]
      %v838 = vld [vmem:[%s2 + $0x28] sm:$0xf]
      %v839 = vld [vmem:[%s2 + $0x2c] sm:$0xf]
      %v840 = vld [vmem:[%s2 + $0x30] sm:$0xf]
      %v841 = vld [vmem:[%s2 + $0x34] sm:$0xf]
      %v842 = vld [vmem:[%s2 + $0x38] sm:$0xf]
      %v843 = vld [vmem:[%s2 + $0x3c] sm:$0xf]
      %v844 = vld [vmem:[%s3] sm:$0x1]
      %v846 = vlaneseq
      %v847 = vshrl.u32 %v846, 7
      %v848 = vsub.s32 0, %v847
      %v849 = vrot.slane %v844, %v848
      %v867 = vunpack.c.l.b16 %v828
      %v868 = vunpack.c.l.b16 %v829
      %v869 = vunpack.c.l.b16 %v830
      %v870 = vunpack.c.l.b16 %v831
      %v871 = vunpack.c.l.b16 %v832
      %v872 = vunpack.c.l.b16 %v833
      %v873 = vunpack.c.l.b16 %v834
      %v874 = vunpack.c.l.b16 %v835
      %v875 = vunpack.c.l.b16 %v836
      %v876 = vunpack.c.l.b16 %v837
      %v877 = vunpack.c.l.b16 %v838
      %v878 = vunpack.c.l.b16 %v839
      %v879 = vunpack.c.l.b16 %v840
      %v880 = vunpack.c.l.b16 %v841
      %v881 = vunpack.c.l.b16 %v842
      %v882 = vunpack.c.l.b16 %v843
      %v883 = vpack.c.b16 %v868, %v867
      %v884 = vpack.c.b16 %v870, %v869
      %v885 = vpack.c.b16 %v872, %v871
      %v886 = vpack.c.b16 %v874, %v873
      %v887 = vpack.c.b16 %v876, %v875
      %v888 = vpack.c.b16 %v878, %v877
      %v889 = vpack.c.b16 %v880, %v879
      %v890 = vpack.c.b16 %v882, %v881
      %899 = vmatprep.subr.bf16.mxu0 0
      %900 = vmatpush1.bf16.msra.mxu0 %v883
      %901 = vmatprep.subr.bf16.mxu0 0
      %902 = vmatpush1.bf16.msra.mxu0 %v884
      %903 = vmatprep.subr.bf16.mxu0 0
      %904 = vmatpush1.bf16.msra.mxu0 %v885
      %905 = vmatprep.subr.bf16.mxu0 0
      %906 = vmatpush1.bf16.msra.mxu0 %v886
      %907 = vmatprep.subr.bf16.mxu0 0
      %908 = vmatpush1.bf16.msra.mxu0 %v887
      %909 = vmatprep.subr.bf16.mxu0 0
      %910 = vmatpush1.bf16.msra.mxu0 %v888
      %911 = vmatprep.subr.bf16.mxu0 0
      %912 = vmatpush1.bf16.msra.mxu0 %v889
      %913 = vmatprep.subr.bf16.mxu0 0
      %914 = vmatpush1.bf16.msra.mxu0 %v890
      %915 = vmatprep.subr.bf16.mxu0 0
      %916 = vmatpush1.bf16.msra.mxu0 0
      %917 = vmatprep.subr.bf16.mxu0 0
      %918 = vmatpush1.bf16.msra.mxu0 0
      %919 = vmatprep.subr.bf16.mxu0 0
      %920 = vmatpush1.bf16.msra.mxu0 0
      %921 = vmatprep.subr.bf16.mxu0 0
      %922 = vmatpush1.bf16.msra.mxu0 0
      %923 = vmatprep.subr.bf16.mxu0 0
      %924 = vmatpush1.bf16.msra.mxu0 0
      %925 = vmatprep.subr.bf16.mxu0 0
      %926 = vmatpush1.bf16.msra.mxu0 0
      %927 = vmatprep.subr.bf16.mxu0 0
      %928 = vmatpush1.bf16.msra.mxu0 0
      %929 = vmatprep.subr.bf16.mxu0 0
      %930 = vmatpush1.bf16.msra.mxu0 0
      %931 = vmatprep.mubr.bf16.mxu0 0
      %932 = vmatmul.mubr.bf16.gmra.mrb[0].mxu0 %v812
      %v933 = vpop.f32.mrb[0].mxu0
      %v934 = vadd.f32 %v849, %v933
      %v935 = vpop.f32.mrb[0].mxu0
      %v936 = vpop.f32.mrb[0].mxu0
      %v937 = vadd.f32 %v849, %v936
      %v938 = vpop.f32.mrb[0].mxu0
      %939 = vmatprep.mubr.bf16.mxu0 0
      %940 = vmatmul.mubr.bf16.gmra.mrb[0].mxu0 %v814
      %v941 = vpop.f32.mrb[0].mxu0
      %v942 = vadd.f32 %v849, %v941
      %v943 = vpop.f32.mrb[0].mxu0
      %v944 = vpop.f32.mrb[0].mxu0
      %v945 = vadd.f32 %v849, %v944
      %v946 = vpop.f32.mrb[0].mxu0
      %947 = vmatprep.mubr.bf16.mxu0 0
      %948 = vmatmul.mubr.bf16.gmra.mrb[0].mxu0 %v816
      %v949 = vpop.f32.mrb[0].mxu0
      %v950 = vadd.f32 %v849, %v949
      %v951 = vpop.f32.mrb[0].mxu0
      %v952 = vpop.f32.mrb[0].mxu0
      %v953 = vadd.f32 %v849, %v952
      %v954 = vpop.f32.mrb[0].mxu0
      %955 = vmatprep.mubr.bf16.mxu0 0
      %956 = vmatmul.mubr.bf16.gmra.mrb[0].mxu0 %v818
      %v957 = vpop.f32.mrb[0].mxu0
      %v958 = vadd.f32 %v849, %v957
      %v959 = vpop.f32.mrb[0].mxu0
      %v960 = vpop.f32.mrb[0].mxu0
      %v961 = vadd.f32 %v849, %v960
      %v962 = vpop.f32.mrb[0].mxu0
      %963 = vmatprep.mubr.bf16.mxu0 0
      %964 = vmatmul.mubr.bf16.gmra.mrb[0].mxu0 %v820
      %v965 = vpop.f32.mrb[0].mxu0
      %v966 = vadd.f32 %v849, %v965
      %v967 = vpop.f32.mrb[0].mxu0
      %v968 = vpop.f32.mrb[0].mxu0
      %v969 = vadd.f32 %v849, %v968
      %v970 = vpop.f32.mrb[0].mxu0
      %971 = vmatprep.mubr.bf16.mxu0 0
      %972 = vmatmul.mubr.bf16.gmra.mrb[0].mxu0 %v822
      %v973 = vpop.f32.mrb[0].mxu0
      %v974 = vadd.f32 %v849, %v973
      %v975 = vpop.f32.mrb[0].mxu0
      %v976 = vpop.f32.mrb[0].mxu0
      %v977 = vadd.f32 %v849, %v976
      %v978 = vpop.f32.mrb[0].mxu0
      %979 = vmatprep.mubr.bf16.mxu0 0
      %980 = vmatmul.mubr.bf16.gmra.mrb[0].mxu0 %v824
      %v981 = vpop.f32.mrb[0].mxu0
      %v982 = vadd.f32 %v849, %v981
      %v983 = vpop.f32.mrb[0].mxu0
      %v984 = vpop.f32.mrb[0].mxu0
      %v985 = vadd.f32 %v849, %v984
      %v986 = vpop.f32.mrb[0].mxu0
      %987 = vmatprep.mubr.bf16.mxu0 0
      %988 = vmatmul.mubr.bf16.gmra.mrb[0].mxu0 %v826
      %v989 = vpop.f32.mrb[0].mxu0
      %v990 = vadd.f32 %v849, %v989
      %v991 = vpop.f32.mrb[0].mxu0
      %v992 = vpop.f32.mrb[0].mxu0
      %v993 = vadd.f32 %v849, %v992
      %v994 = vpop.f32.mrb[0].mxu0
      %995 = vdwg.mxu0
      %v996 = vmax.f32 %v934, 0.0
      %v997 = vmax.f32 %v937, 0.0
      %v998 = vmax.f32 %v942, 0.0
      %v999 = vmax.f32 %v945, 0.0
      %v1000 = vmax.f32 %v950, 0.0
      %v1001 = vmax.f32 %v953, 0.0
      %v1002 = vmax.f32 %v958, 0.0
      %v1003 = vmax.f32 %v961, 0.0
      %v1004 = vmax.f32 %v966, 0.0
      %v1005 = vmax.f32 %v969, 0.0
      %v1006 = vmax.f32 %v974, 0.0
      %v1007 = vmax.f32 %v977, 0.0
      %v1008 = vmax.f32 %v982, 0.0
      %v1009 = vmax.f32 %v985, 0.0
      %v1010 = vmax.f32 %v990, 0.0
      %v1011 = vmax.f32 %v993, 0.0
      %v1012 = vpack.c.bf16 %v997, %v996
      %v1013 = vpack.c.bf16 %v999, %v998
      %v1014 = vpack.c.bf16 %v1001, %v1000
      %v1015 = vpack.c.bf16 %v1003, %v1002
      %v1016 = vpack.c.bf16 %v1005, %v1004
      %v1017 = vpack.c.bf16 %v1007, %v1006
      %v1018 = vpack.c.bf16 %v1009, %v1008
      %v1019 = vpack.c.bf16 %v1011, %v1010
      %v1028 = vunpack.c.l.b16 %v1012
      %v1029 = vunpack.c.h.b16 %v1012
      %v1030 = vunpack.c.l.b16 %v1013
      %v1031 = vunpack.c.h.b16 %v1013
      %v1032 = vunpack.c.l.b16 %v1014
      %v1033 = vunpack.c.h.b16 %v1014
      %v1034 = vunpack.c.l.b16 %v1015
      %v1035 = vunpack.c.h.b16 %v1015
      %v1036 = vunpack.c.l.b16 %v1016
      %v1037 = vunpack.c.h.b16 %v1016
      %v1038 = vunpack.c.l.b16 %v1017
      %v1039 = vunpack.c.h.b16 %v1017
      %v1040 = vunpack.c.l.b16 %v1018
      %v1041 = vunpack.c.h.b16 %v1018
      %v1042 = vunpack.c.l.b16 %v1019
      %v1043 = vunpack.c.h.b16 %v1019
      %v1044 = vpack.c.b16 %v1028, %v1028
      %v1045 = vpack.c.b16 %v1029, %v1029
      %v1046 = vpack.c.b16 %v1030, %v1030
      %v1047 = vpack.c.b16 %v1031, %v1031
      %v1048 = vpack.c.b16 %v1032, %v1032
      %v1049 = vpack.c.b16 %v1033, %v1033
      %v1050 = vpack.c.b16 %v1034, %v1034
      %v1051 = vpack.c.b16 %v1035, %v1035
      %v1052 = vpack.c.b16 %v1036, %v1036
      %v1053 = vpack.c.b16 %v1037, %v1037
      %v1054 = vpack.c.b16 %v1038, %v1038
      %v1055 = vpack.c.b16 %v1039, %v1039
      %v1056 = vpack.c.b16 %v1040, %v1040
      %v1057 = vpack.c.b16 %v1041, %v1041
      %v1058 = vpack.c.b16 %v1042, %v1042
      %v1059 = vpack.c.b16 %v1043, %v1043
      %1076 = vst [vmem:[%s255] sm:$0xf] %v1044
      %1077 = vst [vmem:[%s255 + $0x4] sm:$0xf] %v1045
      %1078 = vst [vmem:[%s255 + $0x8] sm:$0xf] %v1046
      %1079 = vst [vmem:[%s255 + $0xc] sm:$0xf] %v1047
      %1080 = vst [vmem:[%s255 + $0x10] sm:$0xf] %v1048
      %1081 = vst [vmem:[%s255 + $0x14] sm:$0xf] %v1049
      %1082 = vst [vmem:[%s255 + $0x18] sm:$0xf] %v1050
      %1083 = vst [vmem:[%s255 + $0x1c] sm:$0xf] %v1051
      %1084 = vst [vmem:[%s255 + $0x20] sm:$0xf] %v1052
      %1085 = vst [vmem:[%s255 + $0x24] sm:$0xf] %v1053
      %1086 = vst [vmem:[%s255 + $0x28] sm:$0xf] %v1054
      %1087 = vst [vmem:[%s255 + $0x2c] sm:$0xf] %v1055
      %1088 = vst [vmem:[%s255 + $0x30] sm:$0xf] %v1056
      %1089 = vst [vmem:[%s255 + $0x34] sm:$0xf] %v1057
      %1090 = vst [vmem:[%s255 + $0x38] sm:$0xf] %v1058
      %1091 = vst [vmem:[%s255 + $0x3c] sm:$0xf] %v1059
      %s1092 = smul.u32 16, %s15
      %p1093 = scmp.lt.s32.totalorder %s1092, 95
      %s1094 = scalar_select %p1093, %s1092, 95
      %s1095 = smul.addr %s1094, 4
      %s1096 = scalar_lea.vmem %s4, %s1095
      // Predicated region
      $region37: #{convolution_block_forward.1} parent=35 // pred_check
        %p1097 = pneg %p131
      $region38: #{convolution_block_forward.1} parent=35 // pred_check_branch
        %1099 = sbr.rel (%p1097) target = $region40
      $region39: #{convolution_block_forward.1} parent=35 // pred_region
        %s1100 = smul.u32 16, %s15
      $region40: #{convolution_block_forward.1} parent=35 // pred_fallthru
        _
    $region36: #{convolution_block_forward.1} parent=5 // pred_fallthru
      _
    %p1101 = scmp.le.s32.totalorder 2, %s10
    // Predicated region
    $region41: #{convolution_block_forward.1} parent=5 // pred_check
      %p1102 = pneg %p1101
    $region42: #{convolution_block_forward.1} parent=5 // pred_check_branch
      %1104 = sbr.rel (%p1102) target = $region44
    $region43: #{convolution_block_forward.1} parent=5 // pred_region
      %s1105 = ssub.s32 %s10, 2
      // Predicated region
      $region45: #{convolution_block_forward.1} parent=43 // pred_check
        %p1106 = pneg %p137
      $region46: #{convolution_block_forward.1} parent=43 // pred_check_branch
        %1108 = sbr.rel (%p1106) target = $region48
      $region47: #{convolution_block_forward.1} parent=43 // pred_region
        %s1109 = smul.u32 16, %s16
        %p1110 = scmp.lt.s32.totalorder %s1109, 95
        %s1111 = scalar_select %p1110, %s1109, 95
        %s1112 = smul.addr %s1111, 4
        %s1113 = scalar_lea.vmem %s4, %s1112
      $region48: #{convolution_block_forward.1} parent=43 // pred_fallthru
        _
    $region44: #{convolution_block_forward.1} parent=5 // pred_fallthru
      _
  $region6: #{convolution_block_forward.1} parent=0 // loop_footer
    %s14 = sadd.s32 1, %s10
  $region7: #{convolution_block_forward.1} parent=0 // loop_footer_branch
    %9 = sbr.rel target = $region3
  $region8: #{convolution_block_forward.1} parent=0 // loop_exit
    _

</llo_original>
